<compile_context>
chip_gen: v6e
topology: v6e:2x2x1
jax: 0.10.0
libtpu: 0.0.40
codegen_flags: <defaults>
</compile_context>

<pallas_src>
import jax
import jax.numpy as jnp
from jax.experimental import pallas as pl
from jax.experimental.pallas import tpu as pltpu


def _agent_kernel(obs_ref, w1, b1, w2, b2, w3, b3, wh, bh, out_ref):
    x = obs_ref[...]  # (TB, obs_dim), f32

    # fused actor||critic trunk: feature axis is [actor_h | critic_h]
    h = jnp.dot(x, w1[...], preferred_element_type=jnp.float32) + b1[...]
    h = jnp.maximum(h, 0.0)
    h = jnp.dot(h, w2[...], preferred_element_type=jnp.float32) + b2[...]
    h = jnp.maximum(h, 0.0)
    h = jnp.dot(h, w3[...], preferred_element_type=jnp.float32) + b3[...]
    h = jnp.maximum(h, 0.0)

    # fused head: columns are [action logits | value]
    out = jnp.dot(h, wh[...], preferred_element_type=jnp.float32) + bh[...]
    out_ref[...] = out.astype(out_ref.dtype)


def fuse_params(p):
    """Build block-diagonal fused weights from per-head (in, out) weights.

    Off-diagonal blocks are exact zeros, so the actor and critic paths stay
    strictly independent (ReLU is elementwise and never mixes features).
    """
    h = p["aw2"].shape[0]
    act = p["awp"].shape[1]
    z_hh = jnp.zeros((h, h), jnp.float32)
    z_ha = jnp.zeros((h, act), jnp.float32)
    z_h1 = jnp.zeros((h, 1), jnp.float32)

    fused = {
        "w1": jnp.concatenate([p["aw1"], p["cw1"]], axis=1),          # (obs, 2h)
        "b1": jnp.concatenate([p["ab1"], p["cb1"]], axis=1),          # (1, 2h)
        "w2": jnp.block([[p["aw2"], z_hh], [z_hh, p["cw2"]]]),        # (2h, 2h)
        "b2": jnp.concatenate([p["ab2"], p["cb2"]], axis=1),
        "w3": jnp.block([[p["aw3"], z_hh], [z_hh, p["cw3"]]]),        # (2h, 2h)
        "b3": jnp.concatenate([p["ab3"], p["cb3"]], axis=1),
        "wh": jnp.block([[p["awp"], z_h1], [z_ha, p["cw4"]]]),        # (2h, act+1)
        "bh": jnp.concatenate([p["abp"], p["cb4"]], axis=1),          # (1, act+1)
    }
    return fused


def _round_up(x, m):
    return ((x + m - 1) // m) * m


def _choose_batch_tile(B):
    """Batch tile: 256..2048 rows, >=2 grid steps for large B (v7x megacore),
    single full-batch block for small B (block == full dim is always legal)."""
    tb = min(2048, _round_up(pl.cdiv(B, 2), 256))
    return B if tb >= B else tb


def agent_forward(obs, fused):
    """obs: (B, obs_dim) f32. fused: dict from fuse_params()."""
    B, obs_dim = obs.shape
    h2 = fused["w1"].shape[1]               # 2 * h_dim
    out_dim = fused["wh"].shape[1]          # action_dim + 1
    action_dim = out_dim - 1

    TB = _choose_batch_tile(B)
    grid = (pl.cdiv(B, TB),)                # partial last block, no pad copy

    ordered = [fused["w1"], fused["b1"], fused["w2"], fused["b2"],
               fused["w3"], fused["b3"], fused["wh"], fused["bh"]]

    def const_spec(arr):
        # Full-array block with constant block index: weights stay
        # VMEM-resident across grid steps (no re-DMA per batch tile).
        return pl.BlockSpec(arr.shape, lambda i: (0, 0))

    flops = 2 * B * (obs_dim * h2 + h2 * h2 + h2 * h2 + h2 * out_dim)
    weight_bytes = sum(int(a.size) * a.dtype.itemsize for a in ordered)
    bytes_accessed = 4 * B * (obs_dim + out_dim) + weight_bytes
    cost = pl.CostEstimate(flops=flops, transcendentals=0,
                           bytes_accessed=bytes_accessed)

    out = pl.pallas_call(
        _agent_kernel,
        out_shape=jax.ShapeDtypeStruct((B, out_dim), jnp.float32),
        grid=grid,
        in_specs=[pl.BlockSpec((TB, obs_dim), lambda i: (i, 0))]
                 + [const_spec(a) for a in ordered],
        out_specs=pl.BlockSpec((TB, out_dim), lambda i: (i, 0)),
        compiler_params=pltpu.CompilerParams(
            dimension_semantics=("parallel",)),
        cost_estimate=cost,
    )(obs, *ordered)

    policy = out[:, :action_dim]            # raw action logits
    baseline = out[:, action_dim]           # squeeze(-1) — glue, plain JAX
    return policy, baseline


def init_params(key, obs_dim, action_dim, h_dim):
    """Deterministic synthetic parameters. Weights stored as (in, out)."""
    def linear(k, fan_in, fan_out):
        kw, kb = jax.random.split(k)
        bound = 1.0 / jnp.sqrt(fan_in)
        w = jax.random.uniform(kw, (fan_in, fan_out), jnp.float32, -bound, bound)
        b = jax.random.uniform(kb, (1, fan_out), jnp.float32, -bound, bound)
        return w, b

    keys = jax.random.split(key, 8)
    p = {}
    p["aw1"], p["ab1"] = linear(keys[0], obs_dim, h_dim)
    p["aw2"], p["ab2"] = linear(keys[1], h_dim, h_dim)
    p["aw3"], p["ab3"] = linear(keys[2], h_dim, h_dim)
    p["awp"], p["abp"] = linear(keys[3], h_dim, action_dim)
    p["cw1"], p["cb1"] = linear(keys[4], obs_dim, h_dim)
    p["cw2"], p["cb2"] = linear(keys[5], h_dim, h_dim)
    p["cw3"], p["cb3"] = linear(keys[6], h_dim, h_dim)
    p["cw4"], p["cb4"] = linear(keys[7], h_dim, 1)
    return p


def _reference(obs, p):
    relu = lambda z: jnp.maximum(z, 0.0)
    h = relu(obs @ p["aw1"] + p["ab1"])
    h = relu(h @ p["aw2"] + p["ab2"])
    h = relu(h @ p["aw3"] + p["ab3"])
    logits = h @ p["awp"] + p["abp"]
    c = relu(obs @ p["cw1"] + p["cb1"])
    c = relu(c @ p["cw2"] + p["cb2"])
    c = relu(c @ p["cw3"] + p["cb3"])
    v = (c @ p["cw4"] + p["cb4"])[:, 0]
    return logits, v


if __name__ == "__main__":
    obs_dim, action_dim, h_dim = 16, 4, 32

    key = jax.random.PRNGKey(0)
    k_obs, k_obs2, k_par = jax.random.split(key, 3)
    params = init_params(k_par, obs_dim, action_dim, h_dim)
    fused = fuse_params(params)
    fwd = jax.jit(agent_forward)

    # Small batch: single full-batch block.
    B = 8
    obs = jax.random.normal(k_obs, (B, obs_dim), jnp.float32)
    policy, baseline = fwd(obs, fused)
    jax.block_until_ready((policy, baseline))
    ref_policy, ref_baseline = _reference(obs, params)
    assert policy.shape == (B, action_dim)
    assert baseline.shape == (B,)
    assert jnp.allclose(policy, ref_policy, atol=1e-4, rtol=1e-4)
    assert jnp.allclose(baseline, ref_baseline, atol=1e-4, rtol=1e-4)

    # Tile-misaligned batch: 2 grid steps, partial last block, no pad copy.
    B2 = 600
    obs2 = jax.random.normal(k_obs2, (B2, obs_dim), jnp.float32)
    policy2, baseline2 = fwd(obs2, fused)
    jax.block_until_ready((policy2, baseline2))
    ref_policy2, ref_baseline2 = _reference(obs2, params)
    assert policy2.shape == (B2, action_dim)
    assert baseline2.shape == (B2,)
    assert jnp.allclose(policy2, ref_policy2, atol=1e-4, rtol=1e-4)
    assert jnp.allclose(baseline2, ref_baseline2, atol=1e-4, rtol=1e-4)

    print("KERNEL_OK")
</pallas_src>

<mosaic_0001>
module attributes {stable_mosaic.version = 11 : i64} {
  func.func @_agent_kernel(%arg0: i32, %arg1: memref<8x16xf32, #tpu.memory_space<vmem>>, %arg2: memref<16x64xf32, #tpu.memory_space<vmem>>, %arg3: memref<1x64xf32, #tpu.memory_space<vmem>>, %arg4: memref<64x64xf32, #tpu.memory_space<vmem>>, %arg5: memref<1x64xf32, #tpu.memory_space<vmem>>, %arg6: memref<64x64xf32, #tpu.memory_space<vmem>>, %arg7: memref<1x64xf32, #tpu.memory_space<vmem>>, %arg8: memref<64x5xf32, #tpu.memory_space<vmem>>, %arg9: memref<1x5xf32, #tpu.memory_space<vmem>>, %arg10: memref<8x5xf32, #tpu.memory_space<vmem>>) attributes {dimension_semantics = [#tpu.dimension_semantics<parallel>], iteration_bounds = array<i64: 1>, scalar_prefetch = 0 : i64, scratch_operands = 0 : i64, tpu.core_type = #tpu.core_type<tc>, window_params = [{transform_indices = @transform_0, window_bounds = array<i64: 8, 16>}, {pipeline_mode = #tpu.pipeline_mode<synchronous>, transform_indices = @transform_1, window_bounds = array<i64: 16, 64>}, {pipeline_mode = #tpu.pipeline_mode<synchronous>, transform_indices = @transform_2, window_bounds = array<i64: 1, 64>}, {pipeline_mode = #tpu.pipeline_mode<synchronous>, transform_indices = @transform_3, window_bounds = array<i64: 64, 64>}, {pipeline_mode = #tpu.pipeline_mode<synchronous>, transform_indices = @transform_4, window_bounds = array<i64: 1, 64>}, {pipeline_mode = #tpu.pipeline_mode<synchronous>, transform_indices = @transform_5, window_bounds = array<i64: 64, 64>}, {pipeline_mode = #tpu.pipeline_mode<synchronous>, transform_indices = @transform_6, window_bounds = array<i64: 1, 64>}, {pipeline_mode = #tpu.pipeline_mode<synchronous>, transform_indices = @transform_7, window_bounds = array<i64: 64, 5>}, {pipeline_mode = #tpu.pipeline_mode<synchronous>, transform_indices = @transform_8, window_bounds = array<i64: 1, 5>}, {transform_indices = @transform_9, window_bounds = array<i64: 8, 5>}]} {
    %c0 = arith.constant 0 : index
    %c0_0 = arith.constant 0 : index
    %0 = vector.load %arg1[%c0, %c0_0] : memref<8x16xf32, #tpu.memory_space<vmem>>, vector<8x16xf32>
    %c0_1 = arith.constant 0 : index
    %c0_2 = arith.constant 0 : index
    %1 = vector.load %arg2[%c0_1, %c0_2] : memref<16x64xf32, #tpu.memory_space<vmem>>, vector<16x64xf32>
    %cst = arith.constant dense<0.000000e+00> : vector<8x64xf32>
    %2 = tpu.matmul %0, %1, %cst {dimension_numbers = #tpu.dot_dimension_numbers<[1], [0], [0], [1], [0, 0, 1, 1], [], []>} : vector<8x16xf32>, vector<16x64xf32>, vector<8x64xf32> -> vector<8x64xf32>
    %c0_3 = arith.constant 0 : index
    %c0_4 = arith.constant 0 : index
    %3 = vector.load %arg3[%c0_3, %c0_4] : memref<1x64xf32, #tpu.memory_space<vmem>>, vector<1x64xf32>
    %4 = vector.broadcast %3 : vector<1x64xf32> to vector<8x64xf32>
    %5 = arith.addf %2, %4 : vector<8x64xf32>
    %cst_5 = arith.constant 0.000000e+00 : f32
    %6 = vector.broadcast %cst_5 : f32 to vector<8x64xf32>
    %7 = arith.maximumf %5, %6 : vector<8x64xf32>
    %c0_6 = arith.constant 0 : index
    %c0_7 = arith.constant 0 : index
    %8 = vector.load %arg4[%c0_6, %c0_7] : memref<64x64xf32, #tpu.memory_space<vmem>>, vector<64x64xf32>
    %cst_8 = arith.constant dense<0.000000e+00> : vector<8x64xf32>
    %9 = tpu.matmul %7, %8, %cst_8 {dimension_numbers = #tpu.dot_dimension_numbers<[1], [0], [0], [1], [0, 0, 1, 1], [], []>} : vector<8x64xf32>, vector<64x64xf32>, vector<8x64xf32> -> vector<8x64xf32>
    %c0_9 = arith.constant 0 : index
    %c0_10 = arith.constant 0 : index
    %10 = vector.load %arg5[%c0_9, %c0_10] : memref<1x64xf32, #tpu.memory_space<vmem>>, vector<1x64xf32>
    %11 = vector.broadcast %10 : vector<1x64xf32> to vector<8x64xf32>
    %12 = arith.addf %9, %11 : vector<8x64xf32>
    %cst_11 = arith.constant 0.000000e+00 : f32
    %13 = vector.broadcast %cst_11 : f32 to vector<8x64xf32>
    %14 = arith.maximumf %12, %13 : vector<8x64xf32>
    %c0_12 = arith.constant 0 : index
    %c0_13 = arith.constant 0 : index
    %15 = vector.load %arg6[%c0_12, %c0_13] : memref<64x64xf32, #tpu.memory_space<vmem>>, vector<64x64xf32>
    %cst_14 = arith.constant dense<0.000000e+00> : vector<8x64xf32>
    %16 = tpu.matmul %14, %15, %cst_14 {dimension_numbers = #tpu.dot_dimension_numbers<[1], [0], [0], [1], [0, 0, 1, 1], [], []>} : vector<8x64xf32>, vector<64x64xf32>, vector<8x64xf32> -> vector<8x64xf32>
    %c0_15 = arith.constant 0 : index
    %c0_16 = arith.constant 0 : index
    %17 = vector.load %arg7[%c0_15, %c0_16] : memref<1x64xf32, #tpu.memory_space<vmem>>, vector<1x64xf32>
    %18 = vector.broadcast %17 : vector<1x64xf32> to vector<8x64xf32>
    %19 = arith.addf %16, %18 : vector<8x64xf32>
    %cst_17 = arith.constant 0.000000e+00 : f32
    %20 = vector.broadcast %cst_17 : f32 to vector<8x64xf32>
    %21 = arith.maximumf %19, %20 : vector<8x64xf32>
    %c0_18 = arith.constant 0 : index
    %c0_19 = arith.constant 0 : index
    %22 = vector.load %arg8[%c0_18, %c0_19] : memref<64x5xf32, #tpu.memory_space<vmem>>, vector<64x5xf32>
    %cst_20 = arith.constant dense<0.000000e+00> : vector<8x5xf32>
    %23 = tpu.matmul %21, %22, %cst_20 {dimension_numbers = #tpu.dot_dimension_numbers<[1], [0], [0], [1], [0, 0, 1, 1], [], []>} : vector<8x64xf32>, vector<64x5xf32>, vector<8x5xf32> -> vector<8x5xf32>
    %c0_21 = arith.constant 0 : index
    %c0_22 = arith.constant 0 : index
    %24 = vector.load %arg9[%c0_21, %c0_22] : memref<1x5xf32, #tpu.memory_space<vmem>>, vector<1x5xf32>
    %25 = vector.broadcast %24 : vector<1x5xf32> to vector<8x5xf32>
    %26 = arith.addf %23, %25 : vector<8x5xf32>
    %c0_23 = arith.constant 0 : index
    %c0_24 = arith.constant 0 : index
    %27 = vector.load %arg10[%c0_23, %c0_24] : memref<8x5xf32, #tpu.memory_space<vmem>>, vector<8x5xf32>
    tpu.vector_store %arg10[%c0_23, %c0_24], %26 {strides = array<i32>} : memref<8x5xf32, #tpu.memory_space<vmem>>, vector<8x5xf32>,
    return
  }
  func.func @transform_0(%arg0: i32) -> (i32, i32) {
    %c0_i32 = arith.constant 0 : i32
    %c0_i32_0 = arith.constant 0 : i32
    return %arg0, %c0_i32 : i32, i32
  }
  func.func @transform_1(%arg0: i32) -> (i32, i32) {
    %c0_i32 = arith.constant 0 : i32
    %c0_i32_0 = arith.constant 0 : i32
    %c0_i32_1 = arith.constant 0 : i32
    return %c0_i32, %c0_i32_0 : i32, i32
  }
  func.func @transform_2(%arg0: i32) -> (i32, i32) {
    %c0_i32 = arith.constant 0 : i32
    %c0_i32_0 = arith.constant 0 : i32
    %c0_i32_1 = arith.constant 0 : i32
    return %c0_i32, %c0_i32_0 : i32, i32
  }
  func.func @transform_3(%arg0: i32) -> (i32, i32) {
    %c0_i32 = arith.constant 0 : i32
    %c0_i32_0 = arith.constant 0 : i32
    %c0_i32_1 = arith.constant 0 : i32
    return %c0_i32, %c0_i32_0 : i32, i32
  }
  func.func @transform_4(%arg0: i32) -> (i32, i32) {
    %c0_i32 = arith.constant 0 : i32
    %c0_i32_0 = arith.constant 0 : i32
    %c0_i32_1 = arith.constant 0 : i32
    return %c0_i32, %c0_i32_0 : i32, i32
  }
  func.func @transform_5(%arg0: i32) -> (i32, i32) {
    %c0_i32 = arith.constant 0 : i32
    %c0_i32_0 = arith.constant 0 : i32
    %c0_i32_1 = arith.constant 0 : i32
    return %c0_i32, %c0_i32_0 : i32, i32
  }
  func.func @transform_6(%arg0: i32) -> (i32, i32) {
    %c0_i32 = arith.constant 0 : i32
    %c0_i32_0 = arith.constant 0 : i32
    %c0_i32_1 = arith.constant 0 : i32
    return %c0_i32, %c0_i32_0 : i32, i32
  }
  func.func @transform_7(%arg0: i32) -> (i32, i32) {
    %c0_i32 = arith.constant 0 : i32
    %c0_i32_0 = arith.constant 0 : i32
    %c0_i32_1 = arith.constant 0 : i32
    return %c0_i32, %c0_i32_0 : i32, i32
  }
  func.func @transform_8(%arg0: i32) -> (i32, i32) {
    %c0_i32 = arith.constant 0 : i32
    %c0_i32_0 = arith.constant 0 : i32
    %c0_i32_1 = arith.constant 0 : i32
    return %c0_i32, %c0_i32_0 : i32, i32
  }
  func.func @transform_9(%arg0: i32) -> (i32, i32) {
    %c0_i32 = arith.constant 0 : i32
    %c0_i32_0 = arith.constant 0 : i32
    return %arg0, %c0_i32 : i32, i32
  }
}

</mosaic_0001>

<llo_original>
// kernel: agent_forward.1
$region0: #{agent_forward.1}
  #allocation0 [shape = 'u32[]', space=smem, size = 0x4, offset = 0x4, fixed_abs, tag = 'smem constant byte address 0x4 - core index']
  #allocation1 [shape = 'u32[144,128]{1,0:T(1,128)}', space=vmem, size = 0x12000, scoped, tag = 'internal scratch']
  %s0 = inlined_call_operand.hbm [shape: f32[8,16], index: 0, kind: input, shape index: {}]
  %s1 = inlined_call_operand.vmem [shape: f32[16,64], index: 1, kind: input, shape index: {}]
  %s2 = inlined_call_operand.vmem [shape: f32[1,64], index: 2, kind: input, shape index: {}]
  %s3 = inlined_call_operand.vmem [shape: f32[64,64], index: 3, kind: input, shape index: {}]
  %s4 = inlined_call_operand.vmem [shape: f32[1,64], index: 4, kind: input, shape index: {}]
  %s5 = inlined_call_operand.hbm [shape: f32[64,64], index: 5, kind: input, shape index: {}]
  %s6 = inlined_call_operand.hbm [shape: f32[1,64], index: 6, kind: input, shape index: {}]
  %s7 = inlined_call_operand.vmem [shape: f32[64,5], index: 7, kind: input, shape index: {}]
  %s8 = inlined_call_operand.hbm [shape: f32[1,5], index: 8, kind: input, shape index: {}]
  %s9 = inlined_call_operand.vmem [shape: f32[8,5], index: 9, kind: output, shape index: {}]
  %s10 = sld [smem:[#allocation0]]
  $region62: #{agent_forward.1} parent=0
    _
  %s12 = ssub.s32 1, %s10
  %s13 = scalar_select 0, %s12, %s10
  $region1: #{agent_forward.1} parent=0
    #allocation2 [shape = 'u8[4096]{0}', space=vmem, size = 0x1000, scoped, tag = 'input window, operand 0, single buffered']
    #allocation3 [shape = 's32[1]{0}', space=sflag, size = 0x4, scoped, tag = 'scoped memory for agent_forward.1']
    #allocation4 [shape = 'u8[32768]{0}', space=vmem, size = 0x8000, scoped, tag = 'input window, operand 5, single buffered']
    #allocation5 [shape = 's32[1]{0}', space=sflag, size = 0x4, scoped, tag = 'scoped memory for agent_forward.1']
    #allocation6 [shape = 'u8[512]{0}', space=vmem, size = 0x400, scoped, tag = 'input window, operand 6, single buffered']
    #allocation7 [shape = 'u8[512]{0}', space=vmem, size = 0x400, scoped, tag = 'input window, operand 8, single buffered']
    #allocation8 [shape = 's32[1]{0}', space=sflag, size = 0x4, scoped, tag = 'scoped memory for agent_forward.1']
    %14 = vsyncpa [#allocation3], 0
    %15 = vsyncpa [#allocation5], 0
    %16 = vsyncpa [#allocation8], 0
    // Predicated region
    $region2: #{agent_forward.1} parent=1 // pred_check
      _
    $region3: #{agent_forward.1} parent=1 // pred_check_branch
      %18 = sbr.rel (0) target = $region5
    $region4: #{agent_forward.1} parent=1 // pred_region
      %s20 = ssub.s32 128, 128
      %21 = vsyncadd [#allocation3], %s20
      %s23 = sshll.u32 [#allocation2], 4
      %s24 = int_to_ptr.vmem [resolvable:$true] %s23
      %26 = dma.hbm_to_vmem [thread:$0]  %s0, 128, %s24, [#allocation3]
    $region5: #{agent_forward.1} parent=1 // pred_fallthru
      _
    // Predicated region
    $region6: #{agent_forward.1} parent=1 // pred_check
      _
    $region7: #{agent_forward.1} parent=1 // pred_check_branch
      %28 = sbr.rel (0) target = $region9
    $region8: #{agent_forward.1} parent=1 // pred_region
      _
    $region9: #{agent_forward.1} parent=1 // pred_fallthru
      _
    // Predicated region
    $region10: #{agent_forward.1} parent=1 // pred_check
      _
    $region11: #{agent_forward.1} parent=1 // pred_check_branch
      %30 = sbr.rel (0) target = $region13
    $region12: #{agent_forward.1} parent=1 // pred_region
      _
    $region13: #{agent_forward.1} parent=1 // pred_fallthru
      _
    // Predicated region
    $region14: #{agent_forward.1} parent=1 // pred_check
      _
    $region15: #{agent_forward.1} parent=1 // pred_check_branch
      %32 = sbr.rel (0) target = $region17
    $region16: #{agent_forward.1} parent=1 // pred_region
      _
    $region17: #{agent_forward.1} parent=1 // pred_fallthru
      _
    // Predicated region
    $region18: #{agent_forward.1} parent=1 // pred_check
      _
    $region19: #{agent_forward.1} parent=1 // pred_check_branch
      %34 = sbr.rel (0) target = $region21
    $region20: #{agent_forward.1} parent=1 // pred_region
      _
    $region21: #{agent_forward.1} parent=1 // pred_fallthru
      _
    // Predicated region
    $region22: #{agent_forward.1} parent=1 // pred_check
      _
    $region23: #{agent_forward.1} parent=1 // pred_check_branch
      %36 = sbr.rel (0) target = $region25
    $region24: #{agent_forward.1} parent=1 // pred_region
      %s38 = ssub.s32 1024, 1024
      %39 = vsyncadd [#allocation5], %s38
      %s40 = sshll.u32 [#allocation4], 4
      %s41 = int_to_ptr.vmem [resolvable:$true] %s40
      %46 = dma.hbm_to_vmem [thread:$0]  %s5, 1024, %s41, [#allocation5], 128, 128, 8
    $region25: #{agent_forward.1} parent=1 // pred_fallthru
      _
    // Predicated region
    $region26: #{agent_forward.1} parent=1 // pred_check
      _
    $region27: #{agent_forward.1} parent=1 // pred_check_branch
      %48 = sbr.rel (0) target = $region29
    $region28: #{agent_forward.1} parent=1 // pred_region
      %s50 = ssub.s32 16, 16
      %51 = vsyncadd [#allocation5], %s50
      %s53 = sshll.u32 [#allocation6], 4
      %s54 = int_to_ptr.vmem [resolvable:$true] %s53
      %56 = dma.hbm_to_vmem [thread:$0]  %s6, 16, %s54, [#allocation5]
    $region29: #{agent_forward.1} parent=1 // pred_fallthru
      _
    // Predicated region
    $region30: #{agent_forward.1} parent=1 // pred_check
      _
    $region31: #{agent_forward.1} parent=1 // pred_check_branch
      %58 = sbr.rel (0) target = $region33
    $region32: #{agent_forward.1} parent=1 // pred_region
      _
    $region33: #{agent_forward.1} parent=1 // pred_fallthru
      _
    // Predicated region
    $region34: #{agent_forward.1} parent=1 // pred_check
      _
    $region35: #{agent_forward.1} parent=1 // pred_check_branch
      %60 = sbr.rel (0) target = $region37
    $region36: #{agent_forward.1} parent=1 // pred_region
      %s62 = ssub.s32 16, 16
      %63 = vsyncadd [#allocation8], %s62
      %s65 = sshll.u32 [#allocation7], 4
      %s66 = int_to_ptr.vmem [resolvable:$true] %s65
      %68 = dma.hbm_to_vmem [thread:$0]  %s8, 16, %s66, [#allocation8]
    $region37: #{agent_forward.1} parent=1 // pred_fallthru
      _
    // Predicated region
    $region38: #{agent_forward.1} parent=1 // pred_check
      _
    $region39: #{agent_forward.1} parent=1 // pred_check_branch
      %70 = sbr.rel (0) target = $region41
    $region40: #{agent_forward.1} parent=1 // pred_region
      %71 = dma.done [#allocation3], 128
    $region41: #{agent_forward.1} parent=1 // pred_fallthru
      _
    // Predicated region
    $region42: #{agent_forward.1} parent=1 // pred_check
      _
    $region43: #{agent_forward.1} parent=1 // pred_check_branch
      %73 = sbr.rel (0) target = $region45
    $region44: #{agent_forward.1} parent=1 // pred_region
      %74 = dma.done [#allocation5], 1024
    $region45: #{agent_forward.1} parent=1 // pred_fallthru
      _
    // Predicated region
    $region46: #{agent_forward.1} parent=1 // pred_check
      _
    $region47: #{agent_forward.1} parent=1 // pred_check_branch
      %76 = sbr.rel (0) target = $region49
    $region48: #{agent_forward.1} parent=1 // pred_region
      %77 = dma.done [#allocation5], 16
    $region49: #{agent_forward.1} parent=1 // pred_fallthru
      _
    // Predicated region
    $region50: #{agent_forward.1} parent=1 // pred_check
      _
    $region51: #{agent_forward.1} parent=1 // pred_check_branch
      %79 = sbr.rel (0) target = $region53
    $region52: #{agent_forward.1} parent=1 // pred_region
      %80 = dma.done [#allocation8], 16
    $region53: #{agent_forward.1} parent=1 // pred_fallthru
      _
    %v81 = vld [vmem:[#allocation2] sm:$0xff]
    %v82 = vld [vmem:[%s1] sm:$0xff]
    %v83 = vld [vmem:[%s1 + $0x8] sm:$0xff]
    %v84 = vld [vmem:[%s2] sm:$0x1]
    %v86 = vlaneseq
    %v87 = vshrl.u32 %v86, 7
    %v88 = vsub.s32 0, %v87
    %v89 = vrot.slane %v84, %v88
    %vm91 = vcmask 130048
    %v93 = vsel %vm91, %v81, 0
    %95 = vmatprep.subr.mxu0 0.0
    %96 = vmatpush1.msra.mxu0 0.0
    %97 = vmatprep.subr.mxu0 0.0
    %98 = vmatpush1.msra.mxu0 0.0
    %99 = vmatprep.subr.mxu0 0.0
    %100 = vmatpush1.msra.mxu0 0.0
    %101 = vmatprep.subr.mxu0 0.0
    %102 = vmatpush1.msra.mxu0 0.0
    %103 = vmatprep.subr.mxu0 0.0
    %104 = vmatpush1.msra.mxu0 0.0
    %105 = vmatprep.subr.mxu0 0.0
    %106 = vmatpush1.msra.mxu0 0.0
    %107 = vmatprep.subr.mxu0 0.0
    %108 = vmatpush1.msra.mxu0 0.0
    %109 = vmatprep.subr.mxu0 0.0
    %110 = vmatpush1.msra.mxu0 0.0
    %111 = vmatprep.subr.mxu0 0.0
    %112 = vmatpush1.msra.mxu0 0.0
    %113 = vmatprep.subr.mxu0 0.0
    %114 = vmatpush1.msra.mxu0 0.0
    %115 = vmatprep.subr.mxu0 0.0
    %116 = vmatpush1.msra.mxu0 0.0
    %117 = vmatprep.subr.mxu0 0.0
    %118 = vmatpush1.msra.mxu0 0.0
    %119 = vmatprep.subr.mxu0 0.0
    %120 = vmatpush1.msra.mxu0 0.0
    %121 = vmatprep.subr.mxu0 0.0
    %122 = vmatpush1.msra.mxu0 0.0
    %123 = vmatprep.subr.mxu0 0.0
    %124 = vmatpush1.msra.mxu0 %v83
    %125 = vmatprep.subr.mxu0 0.0
    %126 = vmatpush1.msra.mxu0 %v82
    %127 = vmatprep.subr.mxu0 0.0
    %128 = vmatpush2.msra.mxu0 0.0
    %129 = vmatprep.subr.mxu0 0.0
    %130 = vmatpush2.msra.mxu0 0.0
    %131 = vmatprep.subr.mxu0 0.0
    %132 = vmatpush2.msra.mxu0 0.0
    %133 = vmatprep.subr.mxu0 0.0
    %134 = vmatpush2.msra.mxu0 0.0
    %135 = vmatprep.subr.mxu0 0.0
    %136 = vmatpush2.msra.mxu0 0.0
    %137 = vmatprep.subr.mxu0 0.0
    %138 = vmatpush2.msra.mxu0 0.0
    %139 = vmatprep.subr.mxu0 0.0
    %140 = vmatpush2.msra.mxu0 0.0
    %141 = vmatprep.subr.mxu0 0.0
    %142 = vmatpush2.msra.mxu0 0.0
    %143 = vmatprep.subr.mxu0 0.0
    %144 = vmatpush2.msra.mxu0 0.0
    %145 = vmatprep.subr.mxu0 0.0
    %146 = vmatpush2.msra.mxu0 0.0
    %147 = vmatprep.subr.mxu0 0.0
    %148 = vmatpush2.msra.mxu0 0.0
    %149 = vmatprep.subr.mxu0 0.0
    %150 = vmatpush2.msra.mxu0 0.0
    %151 = vmatprep.subr.mxu0 0.0
    %152 = vmatpush2.msra.mxu0 0.0
    %153 = vmatprep.subr.mxu0 0.0
    %154 = vmatpush2.msra.mxu0 0.0
    %155 = vmatprep.subr.mxu0 0.0
    %156 = vmatpush2.msra.mxu0 0.0
    %157 = vmatprep.subr.mxu0 0.0
    %158 = vmatpush2.msra.mxu0 0.0
    %159 = vmatprep.mubr.f32.mxu0 0.0
    %160 = vmatmul.mubr.f32.gmra.mxu0 %v93
    %v161 = vpop.f32.mrf.mxu0
    %v162 = vadd.f32 %v89, %v161
    %v163 = vpop.f32.mrf.mxu0
    %164 = vdwg.mxu0
    %v165 = vmax.f32 %v162, 0.0
    %v166 = vld [vmem:[%s3] sm:$0xff]
    %v167 = vld [vmem:[%s3 + $0x8] sm:$0xff]
    %v168 = vld [vmem:[%s3 + $0x10] sm:$0xff]
    %v169 = vld [vmem:[%s3 + $0x18] sm:$0xff]
    %v170 = vld [vmem:[%s3 + $0x20] sm:$0xff]
    %v171 = vld [vmem:[%s3 + $0x28] sm:$0xff]
    %v172 = vld [vmem:[%s3 + $0x30] sm:$0xff]
    %v173 = vld [vmem:[%s3 + $0x38] sm:$0xff]
    %v174 = vld [vmem:[%s4] sm:$0x1]
    %v176 = vlaneseq
    %v177 = vshrl.u32 %v176, 7
    %v178 = vsub.s32 0, %v177
    %v179 = vrot.slane %v174, %v178
    %vm181 = vcmask 523264
    %v183 = vsel %vm181, %v165, 0
    %185 = vmatprep.subr.mxu0 0.0
    %186 = vmatpush1.msra.mxu0 0.0
    %187 = vmatprep.subr.mxu0 0.0
    %188 = vmatpush1.msra.mxu0 0.0
    %189 = vmatprep.subr.mxu0 0.0
    %190 = vmatpush1.msra.mxu0 0.0
    %191 = vmatprep.subr.mxu0 0.0
    %192 = vmatpush1.msra.mxu0 0.0
    %193 = vmatprep.subr.mxu0 0.0
    %194 = vmatpush1.msra.mxu0 0.0
    %195 = vmatprep.subr.mxu0 0.0
    %196 = vmatpush1.msra.mxu0 0.0
    %197 = vmatprep.subr.mxu0 0.0
    %198 = vmatpush1.msra.mxu0 0.0
    %199 = vmatprep.subr.mxu0 0.0
    %200 = vmatpush1.msra.mxu0 0.0
    %201 = vmatprep.subr.mxu0 0.0
    %202 = vmatpush1.msra.mxu0 %v173
    %203 = vmatprep.subr.mxu0 0.0
    %204 = vmatpush1.msra.mxu0 %v172
    %205 = vmatprep.subr.mxu0 0.0
    %206 = vmatpush1.msra.mxu0 %v171
    %207 = vmatprep.subr.mxu0 0.0
    %208 = vmatpush1.msra.mxu0 %v170
    %209 = vmatprep.subr.mxu0 0.0
    %210 = vmatpush1.msra.mxu0 %v169
    %211 = vmatprep.subr.mxu0 0.0
    %212 = vmatpush1.msra.mxu0 %v168
    %213 = vmatprep.subr.mxu0 0.0
    %214 = vmatpush1.msra.mxu0 %v167
    %215 = vmatprep.subr.mxu0 0.0
    %216 = vmatpush1.msra.mxu0 %v166
    %217 = vmatprep.subr.mxu0 0.0
    %218 = vmatpush2.msra.mxu0 0.0
    %219 = vmatprep.subr.mxu0 0.0
    %220 = vmatpush2.msra.mxu0 0.0
    %221 = vmatprep.subr.mxu0 0.0
    %222 = vmatpush2.msra.mxu0 0.0
    %223 = vmatprep.subr.mxu0 0.0
    %224 = vmatpush2.msra.mxu0 0.0
    %225 = vmatprep.subr.mxu0 0.0
    %226 = vmatpush2.msra.mxu0 0.0
    %227 = vmatprep.subr.mxu0 0.0
    %228 = vmatpush2.msra.mxu0 0.0
    %229 = vmatprep.subr.mxu0 0.0
    %230 = vmatpush2.msra.mxu0 0.0
    %231 = vmatprep.subr.mxu0 0.0
    %232 = vmatpush2.msra.mxu0 0.0
    %233 = vmatprep.subr.mxu0 0.0
    %234 = vmatpush2.msra.mxu0 0.0
    %235 = vmatprep.subr.mxu0 0.0
    %236 = vmatpush2.msra.mxu0 0.0
    %237 = vmatprep.subr.mxu0 0.0
    %238 = vmatpush2.msra.mxu0 0.0
    %239 = vmatprep.subr.mxu0 0.0
    %240 = vmatpush2.msra.mxu0 0.0
    %241 = vmatprep.subr.mxu0 0.0
    %242 = vmatpush2.msra.mxu0 0.0
    %243 = vmatprep.subr.mxu0 0.0
    %244 = vmatpush2.msra.mxu0 0.0
    %245 = vmatprep.subr.mxu0 0.0
    %246 = vmatpush2.msra.mxu0 0.0
    %247 = vmatprep.subr.mxu0 0.0
    %248 = vmatpush2.msra.mxu0 0.0
    %249 = vmatprep.mubr.f32.mxu0 0.0
    %250 = vmatmul.mubr.f32.gmra.mxu0 %v183
    %v251 = vpop.f32.mrf.mxu0
    %v252 = vadd.f32 %v179, %v251
    %v253 = vpop.f32.mrf.mxu0
    %254 = vdwg.mxu0
    %v255 = vmax.f32 %v252, 0.0
    %v256 = vld [vmem:[#allocation4] sm:$0xff]
    %v257 = vld [vmem:[#allocation4 + $0x8] sm:$0xff]
    %v258 = vld [vmem:[#allocation4 + $0x10] sm:$0xff]
    %v259 = vld [vmem:[#allocation4 + $0x18] sm:$0xff]
    %v260 = vld [vmem:[#allocation4 + $0x20] sm:$0xff]
    %v261 = vld [vmem:[#allocation4 + $0x28] sm:$0xff]
    %v262 = vld [vmem:[#allocation4 + $0x30] sm:$0xff]
    %v263 = vld [vmem:[#allocation4 + $0x38] sm:$0xff]
    %v264 = vld [vmem:[#allocation6] sm:$0x1]
    %v266 = vlaneseq
    %v267 = vshrl.u32 %v266, 7
    %v268 = vsub.s32 0, %v267
    %v269 = vrot.slane %v264, %v268
    %v272 = vsel %vm181, %v255, 0
    %274 = vmatprep.subr.mxu0 0.0
    %275 = vmatpush1.msra.mxu0 0.0
    %276 = vmatprep.subr.mxu0 0.0
    %277 = vmatpush1.msra.mxu0 0.0
    %278 = vmatprep.subr.mxu0 0.0
    %279 = vmatpush1.msra.mxu0 0.0
    %280 = vmatprep.subr.mxu0 0.0
    %281 = vmatpush1.msra.mxu0 0.0
    %282 = vmatprep.subr.mxu0 0.0
    %283 = vmatpush1.msra.mxu0 0.0
    %284 = vmatprep.subr.mxu0 0.0
    %285 = vmatpush1.msra.mxu0 0.0
    %286 = vmatprep.subr.mxu0 0.0
    %287 = vmatpush1.msra.mxu0 0.0
    %288 = vmatprep.subr.mxu0 0.0
    %289 = vmatpush1.msra.mxu0 0.0
    %290 = vmatprep.subr.mxu0 0.0
    %291 = vmatpush1.msra.mxu0 %v263
    %292 = vmatprep.subr.mxu0 0.0
    %293 = vmatpush1.msra.mxu0 %v262
    %294 = vmatprep.subr.mxu0 0.0
    %295 = vmatpush1.msra.mxu0 %v261
    %296 = vmatprep.subr.mxu0 0.0
    %297 = vmatpush1.msra.mxu0 %v260
    %298 = vmatprep.subr.mxu0 0.0
    %299 = vmatpush1.msra.mxu0 %v259
    %300 = vmatprep.subr.mxu0 0.0
    %301 = vmatpush1.msra.mxu0 %v258
    %302 = vmatprep.subr.mxu0 0.0
    %303 = vmatpush1.msra.mxu0 %v257
    %304 = vmatprep.subr.mxu0 0.0
    %305 = vmatpush1.msra.mxu0 %v256
    %306 = vmatprep.subr.mxu0 0.0
    %307 = vmatpush2.msra.mxu0 0.0
    %308 = vmatprep.subr.mxu0 0.0
    %309 = vmatpush2.msra.mxu0 0.0
    %310 = vmatprep.subr.mxu0 0.0
    %311 = vmatpush2.msra.mxu0 0.0
    %312 = vmatprep.subr.mxu0 0.0
    %313 = vmatpush2.msra.mxu0 0.0
    %314 = vmatprep.subr.mxu0 0.0
    %315 = vmatpush2.msra.mxu0 0.0
    %316 = vmatprep.subr.mxu0 0.0
    %317 = vmatpush2.msra.mxu0 0.0
    %318 = vmatprep.subr.mxu0 0.0
    %319 = vmatpush2.msra.mxu0 0.0
    %320 = vmatprep.subr.mxu0 0.0
    %321 = vmatpush2.msra.mxu0 0.0
    %322 = vmatprep.subr.mxu0 0.0
    %323 = vmatpush2.msra.mxu0 0.0
    %324 = vmatprep.subr.mxu0 0.0
    %325 = vmatpush2.msra.mxu0 0.0
    %326 = vmatprep.subr.mxu0 0.0
    %327 = vmatpush2.msra.mxu0 0.0
    %328 = vmatprep.subr.mxu0 0.0
    %329 = vmatpush2.msra.mxu0 0.0
    %330 = vmatprep.subr.mxu0 0.0
    %331 = vmatpush2.msra.mxu0 0.0
    %332 = vmatprep.subr.mxu0 0.0
    %333 = vmatpush2.msra.mxu0 0.0
    %334 = vmatprep.subr.mxu0 0.0
    %335 = vmatpush2.msra.mxu0 0.0
    %336 = vmatprep.subr.mxu0 0.0
    %337 = vmatpush2.msra.mxu0 0.0
    %338 = vmatprep.mubr.f32.mxu0 0.0
    %339 = vmatmul.mubr.f32.gmra.mxu0 %v272
    %v340 = vpop.f32.mrf.mxu0
    %v341 = vadd.f32 %v269, %v340
    %v342 = vpop.f32.mrf.mxu0
    %343 = vdwg.mxu0
    %v344 = vmax.f32 %v341, 0.0
    %v345 = vld [vmem:[%s7] sm:$0xff]
    %v346 = vld [vmem:[%s7 + $0x8] sm:$0xff]
    %v347 = vld [vmem:[%s7 + $0x10] sm:$0xff]
    %v348 = vld [vmem:[%s7 + $0x18] sm:$0xff]
    %v349 = vld [vmem:[%s7 + $0x20] sm:$0xff]
    %v350 = vld [vmem:[%s7 + $0x28] sm:$0xff]
    %v351 = vld [vmem:[%s7 + $0x30] sm:$0xff]
    %v352 = vld [vmem:[%s7 + $0x38] sm:$0xff]
    %v353 = vld [vmem:[#allocation7] sm:$0x1]
    %v355 = vlaneseq
    %v356 = vshrl.u32 %v355, 7
    %v357 = vsub.s32 0, %v356
    %v358 = vrot.slane %v353, %v357
    %v361 = vsel %vm181, %v344, 0
    %363 = vmatprep.subr.mxu0 0.0
    %364 = vmatpush1.msra.mxu0 0.0
    %365 = vmatprep.subr.mxu0 0.0
    %366 = vmatpush1.msra.mxu0 0.0
    %367 = vmatprep.subr.mxu0 0.0
    %368 = vmatpush1.msra.mxu0 0.0
    %369 = vmatprep.subr.mxu0 0.0
    %370 = vmatpush1.msra.mxu0 0.0
    %371 = vmatprep.subr.mxu0 0.0
    %372 = vmatpush1.msra.mxu0 0.0
    %373 = vmatprep.subr.mxu0 0.0
    %374 = vmatpush1.msra.mxu0 0.0
    %375 = vmatprep.subr.mxu0 0.0
    %376 = vmatpush1.msra.mxu0 0.0
    %377 = vmatprep.subr.mxu0 0.0
    %378 = vmatpush1.msra.mxu0 0.0
    %379 = vmatprep.subr.mxu0 0.0
    %380 = vmatpush1.msra.mxu0 %v352
    %381 = vmatprep.subr.mxu0 0.0
    %382 = vmatpush1.msra.mxu0 %v351
    %383 = vmatprep.subr.mxu0 0.0
    %384 = vmatpush1.msra.mxu0 %v350
    %385 = vmatprep.subr.mxu0 0.0
    %386 = vmatpush1.msra.mxu0 %v349
    %387 = vmatprep.subr.mxu0 0.0
    %388 = vmatpush1.msra.mxu0 %v348
    %389 = vmatprep.subr.mxu0 0.0
    %390 = vmatpush1.msra.mxu0 %v347
    %391 = vmatprep.subr.mxu0 0.0
    %392 = vmatpush1.msra.mxu0 %v346
    %393 = vmatprep.subr.mxu0 0.0
    %394 = vmatpush1.msra.mxu0 %v345
    %395 = vmatprep.subr.mxu0 0.0
    %396 = vmatpush2.msra.mxu0 0.0
    %397 = vmatprep.subr.mxu0 0.0
    %398 = vmatpush2.msra.mxu0 0.0
    %399 = vmatprep.subr.mxu0 0.0
    %400 = vmatpush2.msra.mxu0 0.0
    %401 = vmatprep.subr.mxu0 0.0
    %402 = vmatpush2.msra.mxu0 0.0
    %403 = vmatprep.subr.mxu0 0.0
    %404 = vmatpush2.msra.mxu0 0.0
    %405 = vmatprep.subr.mxu0 0.0
    %406 = vmatpush2.msra.mxu0 0.0
    %407 = vmatprep.subr.mxu0 0.0
    %408 = vmatpush2.msra.mxu0 0.0
    %409 = vmatprep.subr.mxu0 0.0
    %410 = vmatpush2.msra.mxu0 0.0
    %411 = vmatprep.subr.mxu0 0.0
    %412 = vmatpush2.msra.mxu0 0.0
    %413 = vmatprep.subr.mxu0 0.0
    %414 = vmatpush2.msra.mxu0 0.0
    %415 = vmatprep.subr.mxu0 0.0
    %416 = vmatpush2.msra.mxu0 0.0
    %417 = vmatprep.subr.mxu0 0.0
    %418 = vmatpush2.msra.mxu0 0.0
    %419 = vmatprep.subr.mxu0 0.0
    %420 = vmatpush2.msra.mxu0 0.0
    %421 = vmatprep.subr.mxu0 0.0
    %422 = vmatpush2.msra.mxu0 0.0
    %423 = vmatprep.subr.mxu0 0.0
    %424 = vmatpush2.msra.mxu0 0.0
    %425 = vmatprep.subr.mxu0 0.0
    %426 = vmatpush2.msra.mxu0 0.0
    %427 = vmatprep.mubr.f32.mxu0 0.0
    %428 = vmatmul.mubr.f32.gmra.mxu0 %v361
    %v429 = vpop.f32.mrf.mxu0
    %v430 = vadd.f32 %v358, %v429
    %v431 = vpop.f32.mrf.mxu0
    %432 = vdwg.mxu0
    %vm433 = vcmask 39936
    %434 = vst.msk [vmem:[%s9] sm:$0xff] %vm433, %v430
    // Predicated region
    $region54: #{agent_forward.1} parent=1 // pred_check
      _
    $region55: #{agent_forward.1} parent=1 // pred_check_branch
      %436 = sbr.rel (0) target = $region57
    $region56: #{agent_forward.1} parent=1 // pred_region
      _
    $region57: #{agent_forward.1} parent=1 // pred_fallthru
      _
    // Predicated region
    $region58: #{agent_forward.1} parent=1 // pred_check
      _
    $region59: #{agent_forward.1} parent=1 // pred_check_branch
      %438 = sbr.rel (0) target = $region61
    $region60: #{agent_forward.1} parent=1 // pred_region
      _
    $region61: #{agent_forward.1} parent=1 // pred_fallthru
      _
    %439 = vsyncpa [#allocation3], 1
    %440 = vsyncpa [#allocation5], 1
    %441 = vsyncpa [#allocation8], 1

</llo_original>
